<compile_context>
chip_gen: v7x
topology: tpu7x:2x2x1
jax: 0.10.0
libtpu: 0.0.40
codegen_flags: <defaults>
</compile_context>

<pallas_src>
import jax
import jax.numpy as jnp
from jax import lax
from jax.experimental import pallas as pl
from jax.experimental.pallas import tpu as pltpu  # noqa: F401  (TPU backend)


# ---------------------------------------------------------------------------
# Single fused kernel: all three normalization chains in one invocation.
# ---------------------------------------------------------------------------
def _maybe_f32(v):
    # Skip identity casts when the input is already float32.
    return v if v.dtype == jnp.float32 else v.astype(jnp.float32)


def _fused_normalize_kernel(x_ref, y_ref, z_ref, xo_ref, yo_ref, zo_ref):
    # ---- x: F.normalize(x); F.normalize(x, eps=1e-3)  (both p=2, dim=1)
    # Fused form: denom = max(||x||, 1e-3 * max(||x||, 1e-12)), applied on
    # squared norms with a single rsqrt (eps^2 values are normal f32).
    x = _maybe_f32(x_ref[...])
    ss_x = jnp.sum(x * x, axis=1, keepdims=True)
    inv_x = lax.rsqrt(jnp.maximum(ss_x, 1e-6 * jnp.maximum(ss_x, 1e-24)))
    xo_ref[...] = (x * inv_x).astype(xo_ref.dtype)

    # ---- y: F.normalize(y, p=1, dim=1); F.normalize(y, dim=2)
    y = _maybe_f32(y_ref[...])
    n1 = jnp.sum(jnp.abs(y), axis=1, keepdims=True)            # (B,1,L)
    y = y * (1.0 / jnp.maximum(n1, 1e-12))                     # per-row recip + bcast mul
    ss_y = jnp.sum(y * y, axis=2, keepdims=True)               # (B,C,1)
    y = y * lax.rsqrt(jnp.maximum(ss_y, 1e-24))                # eps=1e-12 -> eps^2=1e-24
    yo_ref[...] = y.astype(yo_ref.dtype)

    # ---- z: F.normalize(z); F.normalize(z, dim=2, eps=1e-4)
    z = _maybe_f32(z_ref[...])
    ss_z1 = jnp.sum(z * z, axis=1, keepdims=True)              # (B,1,H,W)
    z = z * lax.rsqrt(jnp.maximum(ss_z1, 1e-24))               # eps=1e-12
    ss_z2 = jnp.sum(z * z, axis=2, keepdims=True)              # (B,C,1,W)
    z = z * lax.rsqrt(jnp.maximum(ss_z2, 1e-8))                # eps=1e-4 -> eps^2=1e-8
    zo_ref[...] = z.astype(zo_ref.dtype)


# ---------------------------------------------------------------------------
# Wrapper: one pallas_call, full-array blocks (tensors are KB-scale, VMEM-fits
# with huge margin even on v7x's 64 MiB).  No grid -> no per-step overhead.
# ---------------------------------------------------------------------------
def _full_spec(arr):
    nd = arr.ndim
    return pl.BlockSpec(arr.shape, lambda: (0,) * nd)


@jax.jit
def model_forward(x, y, z):
    out_shape = (
        jax.ShapeDtypeStruct(x.shape, x.dtype),
        jax.ShapeDtypeStruct(y.shape, y.dtype),
        jax.ShapeDtypeStruct(z.shape, z.dtype),
    )
    return pl.pallas_call(
        _fused_normalize_kernel,
        out_shape=out_shape,
        in_specs=[_full_spec(x), _full_spec(y), _full_spec(z)],
        out_specs=(_full_spec(x), _full_spec(y), _full_spec(z)),
    )(x, y, z)


# ---------------------------------------------------------------------------
# Pure-JAX reference (faithful two-pass torch.nn.functional.normalize)
# ---------------------------------------------------------------------------
def _ref_normalize(v, p, dim, eps):
    if p == 1:
        n = jnp.sum(jnp.abs(v), axis=dim, keepdims=True)
    else:
        n = jnp.sqrt(jnp.sum(v * v, axis=dim, keepdims=True))
    return v / jnp.maximum(n, eps)


def _reference(x, y, z):
    x = _ref_normalize(x, 2, 1, 1e-12)
    x = _ref_normalize(x, 2, 1, 1e-3)
    y = _ref_normalize(y, 1, 1, 1e-12)
    y = _ref_normalize(y, 2, 2, 1e-12)
    z = _ref_normalize(z, 2, 1, 1e-12)
    z = _ref_normalize(z, 2, 2, 1e-4)
    return x, y, z


if __name__ == "__main__":
    key = jax.random.PRNGKey(0)
    kx, ky, kz = jax.random.split(key, 3)

    x = jax.random.uniform(kx, (2, 32), dtype=jnp.float32)        # (B, D)
    y = jax.random.uniform(ky, (2, 4, 16), dtype=jnp.float32)     # (B, C, L)
    z = jax.random.uniform(kz, (2, 4, 16, 16), dtype=jnp.float32)  # NCHW

    out = model_forward(x, y, z)
    out = jax.block_until_ready(out)

    ref = _reference(x, y, z)
    for o, r in zip(out, ref):
        assert o.shape == r.shape and o.dtype == r.dtype
        assert jnp.allclose(o, r, atol=1e-5, rtol=1e-5)

    print("KERNEL_OK")
</pallas_src>

<mosaic_0001>
module attributes {stable_mosaic.version = 11 : i64} {
  func.func @_fused_normalize_kernel(%arg0: memref<2x32xf32, #tpu.memory_space<vmem>>, %arg1: memref<2x4x16xf32, #tpu.memory_space<vmem>>, %arg2: memref<2x4x16x16xf32, #tpu.memory_space<vmem>>, %arg3: memref<2x32xf32, #tpu.memory_space<vmem>>, %arg4: memref<2x4x16xf32, #tpu.memory_space<vmem>>, %arg5: memref<2x4x16x16xf32, #tpu.memory_space<vmem>>) attributes {dimension_semantics = [], scalar_prefetch = 0 : i64, scratch_operands = 0 : i64, tpu.core_type = #tpu.core_type<tc>} {
    %c0 = arith.constant 0 : index
    %c0_0 = arith.constant 0 : index
    %0 = vector.load %arg0[%c0, %c0_0] : memref<2x32xf32, #tpu.memory_space<vmem>>, vector<2x32xf32>
    %1 = arith.mulf %0, %0 : vector<2x32xf32>
    %cst = arith.constant dense<0.000000e+00> : vector<2xf32>
    %2 = vector.multi_reduction <add>, %1, %cst [1] : vector<2x32xf32> to vector<2xf32>
    %3 = vector.shape_cast %2 : vector<2xf32> to vector<2x1xf32>
    %cst_1 = arith.constant 1.000000e-24 : f32
    %4 = vector.broadcast %cst_1 : f32 to vector<2x1xf32>
    %5 = arith.maximumf %3, %4 : vector<2x1xf32>
    %cst_2 = arith.constant 9.99999997E-7 : f32
    %6 = vector.broadcast %cst_2 : f32 to vector<2x1xf32>
    %7 = arith.mulf %6, %5 : vector<2x1xf32>
    %8 = arith.maximumf %3, %7 : vector<2x1xf32>
    %9 = math.rsqrt %8 : vector<2x1xf32>
    %10 = vector.broadcast %9 : vector<2x1xf32> to vector<2x32xf32>
    %11 = arith.mulf %0, %10 : vector<2x32xf32>
    %c0_3 = arith.constant 0 : index
    %c0_4 = arith.constant 0 : index
    %12 = vector.load %arg3[%c0_3, %c0_4] : memref<2x32xf32, #tpu.memory_space<vmem>>, vector<2x32xf32>
    tpu.vector_store %arg3[%c0_3, %c0_4], %11 {strides = array<i32>} : memref<2x32xf32, #tpu.memory_space<vmem>>, vector<2x32xf32>,
    %c0_5 = arith.constant 0 : index
    %c0_6 = arith.constant 0 : index
    %c0_7 = arith.constant 0 : index
    %13 = vector.load %arg1[%c0_5, %c0_6, %c0_7] : memref<2x4x16xf32, #tpu.memory_space<vmem>>, vector<2x4x16xf32>
    %14 = math.absf %13 : vector<2x4x16xf32>
    %cst_8 = arith.constant dense<0.000000e+00> : vector<2x16xf32>
    %15 = vector.multi_reduction <add>, %14, %cst_8 [1] : vector<2x4x16xf32> to vector<2x16xf32>
    %16 = vector.shape_cast %15 : vector<2x16xf32> to vector<2x1x16xf32>
    %cst_9 = arith.constant 9.99999996E-13 : f32
    %17 = vector.broadcast %cst_9 : f32 to vector<2x1x16xf32>
    %18 = arith.maximumf %16, %17 : vector<2x1x16xf32>
    %cst_10 = arith.constant 1.000000e+00 : f32
    %19 = vector.broadcast %cst_10 : f32 to vector<2x1x16xf32>
    %20 = arith.divf %19, %18 : vector<2x1x16xf32>
    %21 = vector.broadcast %20 : vector<2x1x16xf32> to vector<2x4x16xf32>
    %22 = arith.mulf %13, %21 : vector<2x4x16xf32>
    %23 = arith.mulf %22, %22 : vector<2x4x16xf32>
    %cst_11 = arith.constant dense<0.000000e+00> : vector<2x4xf32>
    %24 = vector.multi_reduction <add>, %23, %cst_11 [2] : vector<2x4x16xf32> to vector<2x4xf32>
    %25 = vector.shape_cast %24 : vector<2x4xf32> to vector<2x4x1xf32>
    %cst_12 = arith.constant 1.000000e-24 : f32
    %26 = vector.broadcast %cst_12 : f32 to vector<2x4x1xf32>
    %27 = arith.maximumf %25, %26 : vector<2x4x1xf32>
    %28 = math.rsqrt %27 : vector<2x4x1xf32>
    %29 = vector.broadcast %28 : vector<2x4x1xf32> to vector<2x4x16xf32>
    %30 = arith.mulf %22, %29 : vector<2x4x16xf32>
    %c0_13 = arith.constant 0 : index
    %c0_14 = arith.constant 0 : index
    %c0_15 = arith.constant 0 : index
    %31 = vector.load %arg4[%c0_13, %c0_14, %c0_15] : memref<2x4x16xf32, #tpu.memory_space<vmem>>, vector<2x4x16xf32>
    tpu.vector_store %arg4[%c0_13, %c0_14, %c0_15], %30 {strides = array<i32>} : memref<2x4x16xf32, #tpu.memory_space<vmem>>, vector<2x4x16xf32>,
    %c0_16 = arith.constant 0 : index
    %c0_17 = arith.constant 0 : index
    %c0_18 = arith.constant 0 : index
    %c0_19 = arith.constant 0 : index
    %32 = vector.load %arg2[%c0_16, %c0_17, %c0_18, %c0_19] : memref<2x4x16x16xf32, #tpu.memory_space<vmem>>, vector<2x4x16x16xf32>
    %33 = arith.mulf %32, %32 : vector<2x4x16x16xf32>
    %cst_20 = arith.constant dense<0.000000e+00> : vector<2x16x16xf32>
    %34 = vector.multi_reduction <add>, %33, %cst_20 [1] : vector<2x4x16x16xf32> to vector<2x16x16xf32>
    %35 = vector.shape_cast %34 : vector<2x16x16xf32> to vector<2x1x16x16xf32>
    %cst_21 = arith.constant 1.000000e-24 : f32
    %36 = vector.broadcast %cst_21 : f32 to vector<2x1x16x16xf32>
    %37 = arith.maximumf %35, %36 : vector<2x1x16x16xf32>
    %38 = math.rsqrt %37 : vector<2x1x16x16xf32>
    %39 = vector.broadcast %38 : vector<2x1x16x16xf32> to vector<2x4x16x16xf32>
    %40 = arith.mulf %32, %39 : vector<2x4x16x16xf32>
    %41 = arith.mulf %40, %40 : vector<2x4x16x16xf32>
    %cst_22 = arith.constant dense<0.000000e+00> : vector<2x4x16xf32>
    %42 = vector.multi_reduction <add>, %41, %cst_22 [2] : vector<2x4x16x16xf32> to vector<2x4x16xf32>
    %43 = vector.shape_cast %42 : vector<2x4x16xf32> to vector<2x4x1x16xf32>
    %cst_23 = arith.constant 9.99999993E-9 : f32
    %44 = vector.broadcast %cst_23 : f32 to vector<2x4x1x16xf32>
    %45 = arith.maximumf %43, %44 : vector<2x4x1x16xf32>
    %46 = math.rsqrt %45 : vector<2x4x1x16xf32>
    %47 = vector.broadcast %46 : vector<2x4x1x16xf32> to vector<2x4x16x16xf32>
    %48 = arith.mulf %40, %47 : vector<2x4x16x16xf32>
    %c0_24 = arith.constant 0 : index
    %c0_25 = arith.constant 0 : index
    %c0_26 = arith.constant 0 : index
    %c0_27 = arith.constant 0 : index
    %49 = vector.load %arg5[%c0_24, %c0_25, %c0_26, %c0_27] : memref<2x4x16x16xf32, #tpu.memory_space<vmem>>, vector<2x4x16x16xf32>
    tpu.vector_store %arg5[%c0_24, %c0_25, %c0_26, %c0_27], %48 {strides = array<i32>} : memref<2x4x16x16xf32, #tpu.memory_space<vmem>>, vector<2x4x16x16xf32>,
    return
  }
}

</mosaic_0001>

<llo_original>
// kernel: model_forward.1
$region0: #{model_forward.1}
  #allocation0 [shape = 'u32[]', space=smem, size = 0x4, offset = 0x4, fixed_abs, tag = 'smem constant byte address 0x4 - core index']
  #allocation1 [shape = 'u32[144,128]{1,0:T(1,128)}', space=vmem, size = 0x12000, scoped, tag = 'internal scratch']
  %s0 = inlined_call_operand.hbm [shape: f32[2,32], index: 0, kind: input, shape index: {}]
  %s1 = inlined_call_operand.hbm [shape: f32[2,4,16], index: 1, kind: input, shape index: {}]
  %s2 = inlined_call_operand.hbm [shape: f32[2,4,16,16], index: 2, kind: input, shape index: {}]
  %s3 = inlined_call_operand.hbm [shape: f32[2,32], index: 3, kind: output, shape index: {0}]
  %s4 = inlined_call_operand.hbm [shape: f32[2,4,16], index: 4, kind: output, shape index: {1}]
  %s5 = inlined_call_operand.hbm [shape: f32[2,4,16,16], index: 5, kind: output, shape index: {2}]
  %6 = xla_tuple %s3, %s4, %s5
  %s7 = sld [smem:[#allocation0]]
  $region50: #{model_forward.1} parent=0
    _
  %s9 = ssub.s32 1, %s7
  %s10 = scalar_select 0, %s9, %s7
  $region1: #{model_forward.1} parent=0
    #allocation2 [shape = 'u8[1024]{0}', space=vmem, size = 0x400, scoped, tag = 'input window, operand 0, single buffered']
    #allocation3 [shape = 's32[1]{0}', space=sflag, size = 0x4, scoped, tag = 'scoped memory for model_forward.1']
    #allocation4 [shape = 's32[1]{0}', space=sflag, size = 0x4, scoped, tag = 'scoped memory for model_forward.1']
    #allocation5 [shape = 'u8[4096]{0}', space=vmem, size = 0x1000, scoped, tag = 'input window, operand 1, single buffered']
    #allocation6 [shape = 's32[1]{0}', space=sflag, size = 0x4, scoped, tag = 'scoped memory for model_forward.1']
    #allocation7 [shape = 'u8[65536]{0}', space=vmem, size = 0x10000, scoped, tag = 'input window, operand 2, single buffered']
    #allocation8 [shape = 'u8[1024]{0}', space=vmem, size = 0x400, scoped, tag = 'output window, operand 0, single buffered']
    #allocation9 [shape = 'u8[4096]{0}', space=vmem, size = 0x1000, scoped, tag = 'output window, operand 1, single buffered']
    #allocation10 [shape = 's32[1]{0}', space=sflag, size = 0x4, scoped, tag = 'scoped memory for model_forward.1']
    #allocation11 [shape = 'u8[65536]{0}', space=vmem, size = 0x10000, scoped, tag = 'output window, operand 2, single buffered']
    %11 = vsyncpa [#allocation3], 0
    %12 = vsyncpa [#allocation6], 0
    %13 = vsyncpa [#allocation4], 0
    %14 = vsyncpa [#allocation10], 0
    // Predicated region
    $region2: #{model_forward.1} parent=1 // pred_check
      _
    $region3: #{model_forward.1} parent=1 // pred_check_branch
      %16 = sbr.rel (0) target = $region5
    $region4: #{model_forward.1} parent=1 // pred_region
      %s18 = ssub.s32 32, 32
      %19 = vsyncadd [#allocation3], %s18
      %s21 = sshll.u32 [#allocation2], 4
      %s22 = int_to_ptr.vmem [resolvable:$true] %s21
      %24 = dma.hbm_to_vmem [thread:$0]  %s0, 32, %s22, [#allocation3]
    $region5: #{model_forward.1} parent=1 // pred_fallthru
      _
    // Predicated region
    $region6: #{model_forward.1} parent=1 // pred_check
      _
    $region7: #{model_forward.1} parent=1 // pred_check_branch
      %26 = sbr.rel (0) target = $region9
    $region8: #{model_forward.1} parent=1 // pred_region
      %s28 = ssub.s32 128, 128
      %29 = vsyncadd [#allocation6], %s28
      %s30 = sshll.u32 [#allocation5], 4
      %s31 = int_to_ptr.vmem [resolvable:$true] %s30
      %36 = dma.hbm_to_vmem [thread:$0]  %s1, 128, %s31, [#allocation6], 64, 64, 4
    $region9: #{model_forward.1} parent=1 // pred_fallthru
      _
    // Predicated region
    $region10: #{model_forward.1} parent=1 // pred_check
      _
    $region11: #{model_forward.1} parent=1 // pred_check_branch
      %38 = sbr.rel (0) target = $region13
    $region12: #{model_forward.1} parent=1 // pred_region
      %s40 = ssub.s32 2048, 2048
      %41 = vsyncadd [#allocation6], %s40
      %s42 = sshll.u32 [#allocation7], 4
      %s43 = int_to_ptr.vmem [resolvable:$true] %s42
      %48 = dma.hbm_to_vmem [thread:$0]  %s2, 2048, %s43, [#allocation6], 128, 128, 8
    $region13: #{model_forward.1} parent=1 // pred_fallthru
      _
    // Predicated region
    $region14: #{model_forward.1} parent=1 // pred_check
      _
    $region15: #{model_forward.1} parent=1 // pred_check_branch
      %50 = sbr.rel (0) target = $region17
    $region16: #{model_forward.1} parent=1 // pred_region
      %51 = dma.done [#allocation3], 32
    $region17: #{model_forward.1} parent=1 // pred_fallthru
      _
    // Predicated region
    $region18: #{model_forward.1} parent=1 // pred_check
      _
    $region19: #{model_forward.1} parent=1 // pred_check_branch
      %53 = sbr.rel (0) target = $region21
    $region20: #{model_forward.1} parent=1 // pred_region
      %54 = dma.done [#allocation6], 128
    $region21: #{model_forward.1} parent=1 // pred_fallthru
      _
    // Predicated region
    $region22: #{model_forward.1} parent=1 // pred_check
      _
    $region23: #{model_forward.1} parent=1 // pred_check_branch
      %56 = sbr.rel (0) target = $region25
    $region24: #{model_forward.1} parent=1 // pred_region
      %57 = dma.done [#allocation6], 2048
    $region25: #{model_forward.1} parent=1 // pred_fallthru
      _
    %v58 = vld [vmem:[#allocation2] sm:$0x3]
    %v59 = vmul.f32 %v58, %v58
    %vm60 = vcmask 254976
    %v61 = vsel %vm60, %v59, 0.0
    %62 = vadd.xlane.f32.xlu0 %v61
    %v63 = vpop.xlane.xlu0 %62
    %v64 = vmax.f32 %v63, 1e-24
    %v65 = vmul.f32 %v64, 1e-06
    %v66 = vmax.f32 %v63, %v65
    %v67 = vrsqrt.pop %v66
    %v68 = vmul.f32 %v58, %v67
    %69 = vst.msk [vmem:[#allocation8] sm:$0x3] %vm60, %v68
    %v70 = vld [vmem:[#allocation5] sm:$0xf]
    %v71 = vld [vmem:[#allocation5 + $0x4] sm:$0xf]
    %v72 = vand.u32 2147483647, %v70
    %v73 = vand.u32 2147483647, %v71
    %vm74 = vcmask 125952
    %v75 = vsel %vm74, %v72, 0.0
    %v76 = vrot.slane %v75, 4
    %v77 = vadd.f32 %v75, %v76
    %v78 = vrot.slane %v77, 2
    %v79 = vadd.f32 %v77, %v78
    %v80 = vrot.slane %v79, 1
    %v81 = vadd.f32 %v79, %v80
    %v82 = vsel %vm74, %v73, 0.0
    %v83 = vrot.slane %v82, 4
    %v84 = vadd.f32 %v82, %v83
    %v85 = vrot.slane %v84, 2
    %v86 = vadd.f32 %v84, %v85
    %v87 = vrot.slane %v86, 1
    %v88 = vadd.f32 %v86, %v87
    %v89 = vmax.f32 %v81, 1e-12
    %v90 = vmax.f32 %v88, 1e-12
    %v91 = vrcp.pop %v89
    %v92 = vmul.f32 1.0, %v91
    %v93 = vrcp.pop %v90
    %v94 = vmul.f32 1.0, %v93
    %v95 = vmul.f32 %v70, %v92
    %v96 = vmul.f32 %v71, %v94
    %v97 = vmul.f32 %v95, %v95
    %v98 = vmul.f32 %v96, %v96
    %v99 = vsel %vm74, %v97, 0.0
    %100 = vadd.xlane.f32.xlu0 %v99
    %v101 = vpop.xlane.xlu0 %100
    %v102 = vsel %vm74, %v98, 0.0
    %103 = vadd.xlane.f32.xlu0 %v102
    %v104 = vpop.xlane.xlu0 %103
    %v105 = vmax.f32 %v101, 1e-24
    %v106 = vmax.f32 %v104, 1e-24
    %v107 = vrsqrt.pop %v105
    %v108 = vrsqrt.pop %v106
    %v109 = vmul.f32 %v95, %v107
    %v110 = vmul.f32 %v96, %v108
    %111 = vst.msk [vmem:[#allocation9] sm:$0xf] %vm74, %v109
    %112 = vst.msk [vmem:[#allocation9 + $0x4] sm:$0xf] %vm74, %v110
    %v113 = vld [vmem:[#allocation7] sm:$0xff]
    %v114 = vld [vmem:[#allocation7 + $0x8] sm:$0xff]
    %v115 = vld [vmem:[#allocation7 + $0x10] sm:$0xff]
    %v116 = vld [vmem:[#allocation7 + $0x18] sm:$0xff]
    %v117 = vld [vmem:[#allocation7 + $0x20] sm:$0xff]
    %v118 = vld [vmem:[#allocation7 + $0x28] sm:$0xff]
    %v119 = vld [vmem:[#allocation7 + $0x30] sm:$0xff]
    %v120 = vld [vmem:[#allocation7 + $0x38] sm:$0xff]
    %v121 = vld [vmem:[#allocation7 + $0x40] sm:$0xff]
    %v122 = vld [vmem:[#allocation7 + $0x48] sm:$0xff]
    %v123 = vld [vmem:[#allocation7 + $0x50] sm:$0xff]
    %v124 = vld [vmem:[#allocation7 + $0x58] sm:$0xff]
    %v125 = vld [vmem:[#allocation7 + $0x60] sm:$0xff]
    %v126 = vld [vmem:[#allocation7 + $0x68] sm:$0xff]
    %v127 = vld [vmem:[#allocation7 + $0x70] sm:$0xff]
    %v128 = vld [vmem:[#allocation7 + $0x78] sm:$0xff]
    %v129 = vmul.f32 %v113, %v113
    %v130 = vmul.f32 %v114, %v114
    %v131 = vmul.f32 %v115, %v115
    %v132 = vmul.f32 %v116, %v116
    %v133 = vmul.f32 %v117, %v117
    %v134 = vmul.f32 %v118, %v118
    %v135 = vmul.f32 %v119, %v119
    %v136 = vmul.f32 %v120, %v120
    %v137 = vmul.f32 %v121, %v121
    %v138 = vmul.f32 %v122, %v122
    %v139 = vmul.f32 %v123, %v123
    %v140 = vmul.f32 %v124, %v124
    %v141 = vmul.f32 %v125, %v125
    %v142 = vmul.f32 %v126, %v126
    %v143 = vmul.f32 %v127, %v127
    %v144 = vmul.f32 %v128, %v128
    %vm145 = vcmask 130048
    %v146 = vsel %vm145, %v129, 0.0
    %v147 = vsel %vm145, %v131, 0.0
    %v148 = vadd.f32 %v146, %v147
    %v149 = vsel %vm145, %v133, 0.0
    %v150 = vadd.f32 %v148, %v149
    %v151 = vsel %vm145, %v135, 0.0
    %v152 = vadd.f32 %v150, %v151
    %v153 = vsel %vm145, %v130, 0.0
    %v154 = vsel %vm145, %v132, 0.0
    %v155 = vadd.f32 %v153, %v154
    %v156 = vsel %vm145, %v134, 0.0
    %v157 = vadd.f32 %v155, %v156
    %v158 = vsel %vm145, %v136, 0.0
    %v159 = vadd.f32 %v157, %v158
    %v160 = vsel %vm145, %v137, 0.0
    %v161 = vsel %vm145, %v139, 0.0
    %v162 = vadd.f32 %v160, %v161
    %v163 = vsel %vm145, %v141, 0.0
    %v164 = vadd.f32 %v162, %v163
    %v165 = vsel %vm145, %v143, 0.0
    %v166 = vadd.f32 %v164, %v165
    %v167 = vsel %vm145, %v138, 0.0
    %v168 = vsel %vm145, %v140, 0.0
    %v169 = vadd.f32 %v167, %v168
    %v170 = vsel %vm145, %v142, 0.0
    %v171 = vadd.f32 %v169, %v170
    %v172 = vsel %vm145, %v144, 0.0
    %v173 = vadd.f32 %v171, %v172
    %v174 = vmax.f32 %v152, 1e-24
    %v175 = vmax.f32 %v159, 1e-24
    %v176 = vmax.f32 %v166, 1e-24
    %v177 = vmax.f32 %v173, 1e-24
    %v178 = vrsqrt.pop %v174
    %v179 = vrsqrt.pop %v175
    %v180 = vrsqrt.pop %v176
    %v181 = vrsqrt.pop %v177
    %v182 = vmul.f32 %v113, %v178
    %v183 = vmul.f32 %v114, %v179
    %v184 = vmul.f32 %v115, %v178
    %v185 = vmul.f32 %v116, %v179
    %v186 = vmul.f32 %v117, %v178
    %v187 = vmul.f32 %v118, %v179
    %v188 = vmul.f32 %v119, %v178
    %v189 = vmul.f32 %v120, %v179
    %v190 = vmul.f32 %v121, %v180
    %v191 = vmul.f32 %v122, %v181
    %v192 = vmul.f32 %v123, %v180
    %v193 = vmul.f32 %v124, %v181
    %v194 = vmul.f32 %v125, %v180
    %v195 = vmul.f32 %v126, %v181
    %v196 = vmul.f32 %v127, %v180
    %v197 = vmul.f32 %v128, %v181
    %v198 = vmul.f32 %v182, %v182
    %v199 = vmul.f32 %v183, %v183
    %v200 = vmul.f32 %v184, %v184
    %v201 = vmul.f32 %v185, %v185
    %v202 = vmul.f32 %v186, %v186
    %v203 = vmul.f32 %v187, %v187
    %v204 = vmul.f32 %v188, %v188
    %v205 = vmul.f32 %v189, %v189
    %v206 = vmul.f32 %v190, %v190
    %v207 = vmul.f32 %v191, %v191
    %v208 = vmul.f32 %v192, %v192
    %v209 = vmul.f32 %v193, %v193
    %v210 = vmul.f32 %v194, %v194
    %v211 = vmul.f32 %v195, %v195
    %v212 = vmul.f32 %v196, %v196
    %v213 = vmul.f32 %v197, %v197
    %v214 = vsel %vm145, %v198, 0.0
    %v215 = vsel %vm145, %v199, 0.0
    %v216 = vadd.f32 %v214, %v215
    %v217 = vrot.slane %v216, 4
    %v218 = vadd.f32 %v216, %v217
    %v219 = vrot.slane %v218, 2
    %v220 = vadd.f32 %v218, %v219
    %v221 = vrot.slane %v220, 1
    %v222 = vadd.f32 %v220, %v221
    %v223 = vsel %vm145, %v200, 0.0
    %v224 = vsel %vm145, %v201, 0.0
    %v225 = vadd.f32 %v223, %v224
    %v226 = vrot.slane %v225, 4
    %v227 = vadd.f32 %v225, %v226
    %v228 = vrot.slane %v227, 2
    %v229 = vadd.f32 %v227, %v228
    %v230 = vrot.slane %v229, 1
    %v231 = vadd.f32 %v229, %v230
    %v232 = vsel %vm145, %v202, 0.0
    %v233 = vsel %vm145, %v203, 0.0
    %v234 = vadd.f32 %v232, %v233
    %v235 = vrot.slane %v234, 4
    %v236 = vadd.f32 %v234, %v235
    %v237 = vrot.slane %v236, 2
    %v238 = vadd.f32 %v236, %v237
    %v239 = vrot.slane %v238, 1
    %v240 = vadd.f32 %v238, %v239
    %v241 = vsel %vm145, %v204, 0.0
    %v242 = vsel %vm145, %v205, 0.0
    %v243 = vadd.f32 %v241, %v242
    %v244 = vrot.slane %v243, 4
    %v245 = vadd.f32 %v243, %v244
    %v246 = vrot.slane %v245, 2
    %v247 = vadd.f32 %v245, %v246
    %v248 = vrot.slane %v247, 1
    %v249 = vadd.f32 %v247, %v248
    %v250 = vsel %vm145, %v206, 0.0
    %v251 = vsel %vm145, %v207, 0.0
    %v252 = vadd.f32 %v250, %v251
    %v253 = vrot.slane %v252, 4
    %v254 = vadd.f32 %v252, %v253
    %v255 = vrot.slane %v254, 2
    %v256 = vadd.f32 %v254, %v255
    %v257 = vrot.slane %v256, 1
    %v258 = vadd.f32 %v256, %v257
    %v259 = vsel %vm145, %v208, 0.0
    %v260 = vsel %vm145, %v209, 0.0
    %v261 = vadd.f32 %v259, %v260
    %v262 = vrot.slane %v261, 4
    %v263 = vadd.f32 %v261, %v262
    %v264 = vrot.slane %v263, 2
    %v265 = vadd.f32 %v263, %v264
    %v266 = vrot.slane %v265, 1
    %v267 = vadd.f32 %v265, %v266
    %v268 = vsel %vm145, %v210, 0.0
    %v269 = vsel %vm145, %v211, 0.0
    %v270 = vadd.f32 %v268, %v269
    %v271 = vrot.slane %v270, 4
    %v272 = vadd.f32 %v270, %v271
    %v273 = vrot.slane %v272, 2
    %v274 = vadd.f32 %v272, %v273
    %v275 = vrot.slane %v274, 1
    %v276 = vadd.f32 %v274, %v275
    %v277 = vsel %vm145, %v212, 0.0
    %v278 = vsel %vm145, %v213, 0.0
    %v279 = vadd.f32 %v277, %v278
    %v280 = vrot.slane %v279, 4
    %v281 = vadd.f32 %v279, %v280
    %v282 = vrot.slane %v281, 2
    %v283 = vadd.f32 %v281, %v282
    %v284 = vrot.slane %v283, 1
    %v285 = vadd.f32 %v283, %v284
    %v286 = vmax.f32 %v222, 1e-08
    %v287 = vmax.f32 %v231, 1e-08
    %v288 = vmax.f32 %v240, 1e-08
    %v289 = vmax.f32 %v249, 1e-08
    %v290 = vmax.f32 %v258, 1e-08
    %v291 = vmax.f32 %v267, 1e-08
    %v292 = vmax.f32 %v276, 1e-08
    %v293 = vmax.f32 %v285, 1e-08
    %v294 = vrsqrt.pop %v286
    %v295 = vrsqrt.pop %v287
    %v296 = vrsqrt.pop %v288
    %v297 = vrsqrt.pop %v289
    %v298 = vrsqrt.pop %v290
    %v299 = vrsqrt.pop %v291
    %v300 = vrsqrt.pop %v292
    %v301 = vrsqrt.pop %v293
    %v302 = vmul.f32 %v182, %v294
    %v303 = vmul.f32 %v183, %v294
    %v304 = vmul.f32 %v184, %v295
    %v305 = vmul.f32 %v185, %v295
    %v306 = vmul.f32 %v186, %v296
    %v307 = vmul.f32 %v187, %v296
    %v308 = vmul.f32 %v188, %v297
    %v309 = vmul.f32 %v189, %v297
    %v310 = vmul.f32 %v190, %v298
    %v311 = vmul.f32 %v191, %v298
    %v312 = vmul.f32 %v192, %v299
    %v313 = vmul.f32 %v193, %v299
    %v314 = vmul.f32 %v194, %v300
    %v315 = vmul.f32 %v195, %v300
    %v316 = vmul.f32 %v196, %v301
    %v317 = vmul.f32 %v197, %v301
    %318 = vst.msk [vmem:[#allocation11] sm:$0xff] %vm145, %v302
    %319 = vst.msk [vmem:[#allocation11 + $0x8] sm:$0xff] %vm145, %v303
    %320 = vst.msk [vmem:[#allocation11 + $0x10] sm:$0xff] %vm145, %v304
    %321 = vst.msk [vmem:[#allocation11 + $0x18] sm:$0xff] %vm145, %v305
    %322 = vst.msk [vmem:[#allocation11 + $0x20] sm:$0xff] %vm145, %v306
    %323 = vst.msk [vmem:[#allocation11 + $0x28] sm:$0xff] %vm145, %v307
    %324 = vst.msk [vmem:[#allocation11 + $0x30] sm:$0xff] %vm145, %v308
    %325 = vst.msk [vmem:[#allocation11 + $0x38] sm:$0xff] %vm145, %v309
    %326 = vst.msk [vmem:[#allocation11 + $0x40] sm:$0xff] %vm145, %v310
    %327 = vst.msk [vmem:[#allocation11 + $0x48] sm:$0xff] %vm145, %v311
    %328 = vst.msk [vmem:[#allocation11 + $0x50] sm:$0xff] %vm145, %v312
    %329 = vst.msk [vmem:[#allocation11 + $0x58] sm:$0xff] %vm145, %v313
    %330 = vst.msk [vmem:[#allocation11 + $0x60] sm:$0xff] %vm145, %v314
    %331 = vst.msk [vmem:[#allocation11 + $0x68] sm:$0xff] %vm145, %v315
    %332 = vst.msk [vmem:[#allocation11 + $0x70] sm:$0xff] %vm145, %v316
    %333 = vst.msk [vmem:[#allocation11 + $0x78] sm:$0xff] %vm145, %v317
    // Predicated region
    $region26: #{model_forward.1} parent=1 // pred_check
      _
    $region27: #{model_forward.1} parent=1 // pred_check_branch
      %335 = sbr.rel (0) target = $region29
    $region28: #{model_forward.1} parent=1 // pred_region
      %s337 = ssub.s32 32, 32
      %338 = vsyncadd [#allocation4], %s337
      %s340 = sshll.u32 [#allocation8], 4
      %s341 = int_to_ptr.vmem [resolvable:$true] %s340
      %343 = dma.vmem_to_hbm [thread:$0]  %s341, 32, %s3, [#allocation4]
    $region29: #{model_forward.1} parent=1 // pred_fallthru
      _
    // Predicated region
    $region30: #{model_forward.1} parent=1 // pred_check
      _
    $region31: #{model_forward.1} parent=1 // pred_check_branch
      %345 = sbr.rel (0) target = $region33
    $region32: #{model_forward.1} parent=1 // pred_region
      %s347 = ssub.s32 128, 128
      %348 = vsyncadd [#allocation10], %s347
      %s349 = sshll.u32 [#allocation9], 4
      %s350 = int_to_ptr.vmem [resolvable:$true] %s349
      %355 = dma.vmem_to_hbm [thread:$0]  %s350, 128, %s4, [#allocation10], 64, 64, 4
    $region33: #{model_forward.1} parent=1 // pred_fallthru
      _
    // Predicated region
    $region34: #{model_forward.1} parent=1 // pred_check
      _
    $region35: #{model_forward.1} parent=1 // pred_check_branch
      %357 = sbr.rel (0) target = $region37
    $region36: #{model_forward.1} parent=1 // pred_region
      %s359 = ssub.s32 2048, 2048
      %360 = vsyncadd [#allocation10], %s359
      %s361 = sshll.u32 [#allocation11], 4
      %s362 = int_to_ptr.vmem [resolvable:$true] %s361
      %367 = dma.vmem_to_hbm [thread:$0]  %s362, 2048, %s5, [#allocation10], 128, 128, 8
    $region37: #{model_forward.1} parent=1 // pred_fallthru
      _
    // Predicated region
    $region38: #{model_forward.1} parent=1 // pred_check
      _
    $region39: #{model_forward.1} parent=1 // pred_check_branch
      %369 = sbr.rel (0) target = $region41
    $region40: #{model_forward.1} parent=1 // pred_region
      %370 = dma.done [#allocation4], 32
    $region41: #{model_forward.1} parent=1 // pred_fallthru
      _
    // Predicated region
    $region42: #{model_forward.1} parent=1 // pred_check
      _
    $region43: #{model_forward.1} parent=1 // pred_check_branch
      %372 = sbr.rel (0) target = $region45
    $region44: #{model_forward.1} parent=1 // pred_region
      %373 = dma.done [#allocation10], 128
    $region45: #{model_forward.1} parent=1 // pred_fallthru
      _
    // Predicated region
    $region46: #{model_forward.1} parent=1 // pred_check
      _
    $region47: #{model_forward.1} parent=1 // pred_check_branch
      %375 = sbr.rel (0) target = $region49
    $region48: #{model_forward.1} parent=1 // pred_region
      %376 = dma.done [#allocation10], 2048
    $region49: #{model_forward.1} parent=1 // pred_fallthru
      _
    %377 = vsyncpa [#allocation3], 1
    %378 = vsyncpa [#allocation6], 1
    %379 = vsyncpa [#allocation4], 1
    %380 = vsyncpa [#allocation10], 1

</llo_original>
